<compile_context>
chip_gen: v6e
topology: v6e:2x2x1
jax: 0.10.0
libtpu: 0.0.40
codegen_flags: <defaults>
</compile_context>

<pallas_src>
import jax
import jax.numpy as jnp
from jax.experimental import pallas as pl
from jax.experimental.pallas import tpu as pltpu

INPUT_SIZE = 10
HIDDEN_SIZE = 32
OUTPUT_SIZE = 1


def mlp_kernel(xt_ref, w1_ref, b1_ref, w2_ref, b2_ref, o_ref):
    # xt_ref: [INPUT_SIZE, TB]       one pipelined batch tile (batch in lanes)
    # w1_ref: [HIDDEN_SIZE, INPUT_SIZE]   fc1 weight (PyTorch layout), resident
    # b1_ref: [HIDDEN_SIZE, 1]            fc1 bias column, resident
    # w2_ref: [OUTPUT_SIZE, HIDDEN_SIZE]  fc2 weight, resident
    # b2_ref: [OUTPUT_SIZE, 1]            fc2 bias column, resident
    # o_ref:  [OUTPUT_SIZE, TB]           lane-dense output tile
    xt = xt_ref[...]
    # fc1 on the MXU with f32 accumulation; bias broadcasts across lanes.
    h = jnp.dot(w1_ref[...], xt, preferred_element_type=jnp.float32) + b1_ref[...]
    h = jnp.maximum(h, 0.0)  # ReLU on the VPU
    # fc2 also on the MXU ([1,32]x[32,TB]); result is already lane-dense [1,TB].
    y = jnp.dot(w2_ref[...], h, preferred_element_type=jnp.float32) + b2_ref[...]
    o_ref[...] = y.astype(o_ref.dtype)


def prepare_params(w1, b1, w2, b2):
    """One-time layout prep from PyTorch nn.Linear conventions.

    w1: [hidden, in], b1: [hidden], w2: [out, hidden], b2: [out] (out == 1).
    """
    w1 = jnp.asarray(w1, jnp.float32).reshape(HIDDEN_SIZE, INPUT_SIZE)
    b1_col = jnp.asarray(b1, jnp.float32).reshape(HIDDEN_SIZE, 1)
    w2 = jnp.asarray(w2, jnp.float32).reshape(OUTPUT_SIZE, HIDDEN_SIZE)
    b2_col = jnp.asarray(b2, jnp.float32).reshape(OUTPUT_SIZE, 1)
    return w1, b1_col, w2, b2_col


def _round_up(n, m):
    return ((n + m - 1) // m) * m


def simple_mlp_forward(x, params, *, block_cols=8192,
                       vmem_limit_bytes=32 * 1024 * 1024):
    """x: [B, INPUT_SIZE] f32, params from prepare_params(). Returns [B, 1].

    block_cols is the per-grid-step batch tile (lanes); tune per generation
    (4096-8192 is a good window everywhere; VMEM use is ~0.2 KiB per lane).
    """
    w1, b1_col, w2, b2_col = params
    assert block_cols % 128 == 0 and block_cols >= 128
    B = x.shape[0]
    assert x.shape[1] == INPUT_SIZE

    # Batch lives in the lane dimension: tile must be a multiple of 128.
    tb = min(block_cols, _round_up(B, 128))
    # Keep >= 2 grid steps when possible so v7x's two TensorCores both work.
    if tb >= 256 and _round_up(B, tb) == tb:
        tb = _round_up(tb // 2, 128)
    bp = _round_up(B, tb)
    grid = (bp // tb,)

    # One-time transpose to the batch-in-lanes layout (+ pad lane axis).
    x_t = jnp.asarray(x, jnp.float32).T  # [INPUT_SIZE, B]
    if bp != B:
        x_t = jnp.pad(x_t, ((0, 0), (0, bp - B)))

    resident = lambda shape: pl.BlockSpec(shape, lambda i: (0, 0))

    out = pl.pallas_call(
        mlp_kernel,
        out_shape=jax.ShapeDtypeStruct((OUTPUT_SIZE, bp), jnp.float32),
        grid=grid,
        in_specs=[
            pl.BlockSpec((INPUT_SIZE, tb), lambda i: (0, i)),  # x^T: pipelined
            resident((HIDDEN_SIZE, INPUT_SIZE)),               # w1
            resident((HIDDEN_SIZE, 1)),                        # b1 column
            resident((OUTPUT_SIZE, HIDDEN_SIZE)),              # w2
            resident((OUTPUT_SIZE, 1)),                        # b2 column
        ],
        out_specs=pl.BlockSpec((OUTPUT_SIZE, tb), lambda i: (0, i)),
        compiler_params=pltpu.CompilerParams(
            dimension_semantics=("parallel",),   # megacore split on v7x
            vmem_limit_bytes=vmem_limit_bytes,
        ),
    )(x_t, w1, b1_col, w2, b2_col)

    # [1, bp] lane-dense result -> [B, 1], dropping pad columns.
    return out[0, :B].reshape(B, OUTPUT_SIZE)


def init_params(key):
    """Deterministic init matching nn.Linear shapes (uniform +-1/sqrt(fan_in))."""
    k1, k2, k3, k4 = jax.random.split(key, 4)
    bound1 = 1.0 / (INPUT_SIZE ** 0.5)
    bound2 = 1.0 / (HIDDEN_SIZE ** 0.5)
    w1 = jax.random.uniform(k1, (HIDDEN_SIZE, INPUT_SIZE), jnp.float32, -bound1, bound1)
    b1 = jax.random.uniform(k2, (HIDDEN_SIZE,), jnp.float32, -bound1, bound1)
    w2 = jax.random.uniform(k3, (OUTPUT_SIZE, HIDDEN_SIZE), jnp.float32, -bound2, bound2)
    b2 = jax.random.uniform(k4, (OUTPUT_SIZE,), jnp.float32, -bound2, bound2)
    return w1, b1, w2, b2


def _reference(x, w1, b1, w2, b2):
    hi = jax.lax.Precision.HIGHEST
    h = jnp.maximum(jnp.dot(x, w1.T, precision=hi) + b1, 0.0)
    return jnp.dot(h, w2.T, precision=hi) + b2


if __name__ == "__main__":
    key = jax.random.PRNGKey(0)
    k_x, k_p = jax.random.split(key)
    w1, b1, w2, b2 = init_params(k_p)
    params = prepare_params(w1, b1, w2, b2)

    # Small single-tile case (batch padded 8 -> 128 lanes).
    x_small = jax.random.normal(k_x, (8, INPUT_SIZE), jnp.float32)
    out_small = jax.block_until_ready(simple_mlp_forward(x_small, params))
    ref_small = _reference(x_small, w1, b1, w2, b2)
    assert out_small.shape == (8, OUTPUT_SIZE)
    assert jnp.allclose(out_small, ref_small, atol=1e-4, rtol=1e-4)

    # Multi-tile case: exercises the pipelined batch grid (2 x 1024-lane tiles,
    # so both v7x TensorCores get a step).
    x_big = jax.random.normal(k_x, (2048, INPUT_SIZE), jnp.float32)
    out_big = jax.block_until_ready(simple_mlp_forward(x_big, params))
    ref_big = _reference(x_big, w1, b1, w2, b2)
    assert out_big.shape == (2048, OUTPUT_SIZE)
    assert jnp.allclose(out_big, ref_big, atol=1e-4, rtol=1e-4)

    # Non-tile-multiple batch: exercises lane padding + slice-off.
    x_odd = jax.random.normal(k_x, (300, INPUT_SIZE), jnp.float32)
    out_odd = jax.block_until_ready(simple_mlp_forward(x_odd, params))
    ref_odd = _reference(x_odd, w1, b1, w2, b2)
    assert out_odd.shape == (300, OUTPUT_SIZE)
    assert jnp.allclose(out_odd, ref_odd, atol=1e-4, rtol=1e-4)

    print("KERNEL_OK")
</pallas_src>

<mosaic_0001>
module attributes {stable_mosaic.version = 11 : i64} {
  func.func @mlp_kernel(%arg0: i32, %arg1: memref<10x128xf32, #tpu.memory_space<vmem>>, %arg2: memref<32x10xf32, #tpu.memory_space<vmem>>, %arg3: memref<32x1xf32, #tpu.memory_space<vmem>>, %arg4: memref<1x32xf32, #tpu.memory_space<vmem>>, %arg5: memref<1x1xf32, #tpu.memory_space<vmem>>, %arg6: memref<1x128xf32, #tpu.memory_space<vmem>>) attributes {dimension_semantics = [#tpu.dimension_semantics<parallel>], iteration_bounds = array<i64: 1>, scalar_prefetch = 0 : i64, scratch_operands = 0 : i64, tpu.core_type = #tpu.core_type<tc>, window_params = [{transform_indices = @transform_0, window_bounds = array<i64: 10, 128>}, {pipeline_mode = #tpu.pipeline_mode<synchronous>, transform_indices = @transform_1, window_bounds = array<i64: 32, 10>}, {pipeline_mode = #tpu.pipeline_mode<synchronous>, transform_indices = @transform_2, window_bounds = array<i64: 32, 1>}, {pipeline_mode = #tpu.pipeline_mode<synchronous>, transform_indices = @transform_3, window_bounds = array<i64: 1, 32>}, {pipeline_mode = #tpu.pipeline_mode<synchronous>, transform_indices = @transform_4, window_bounds = array<i64: 1, 1>}, {transform_indices = @transform_5, window_bounds = array<i64: 1, 128>}]} {
    %c0 = arith.constant 0 : index
    %c0_0 = arith.constant 0 : index
    %0 = vector.load %arg1[%c0, %c0_0] : memref<10x128xf32, #tpu.memory_space<vmem>>, vector<10x128xf32>
    %c0_1 = arith.constant 0 : index
    %c0_2 = arith.constant 0 : index
    %1 = vector.load %arg2[%c0_1, %c0_2] : memref<32x10xf32, #tpu.memory_space<vmem>>, vector<32x10xf32>
    %cst = arith.constant dense<0.000000e+00> : vector<32x128xf32>
    %2 = tpu.matmul %1, %0, %cst {dimension_numbers = #tpu.dot_dimension_numbers<[1], [0], [0], [1], [0, 0, 1, 1], [], []>} : vector<32x10xf32>, vector<10x128xf32>, vector<32x128xf32> -> vector<32x128xf32>
    %c0_3 = arith.constant 0 : index
    %c0_4 = arith.constant 0 : index
    %3 = vector.load %arg3[%c0_3, %c0_4] : memref<32x1xf32, #tpu.memory_space<vmem>>, vector<32x1xf32>
    %4 = vector.broadcast %3 : vector<32x1xf32> to vector<32x128xf32>
    %5 = arith.addf %2, %4 : vector<32x128xf32>
    %cst_5 = arith.constant 0.000000e+00 : f32
    %6 = vector.broadcast %cst_5 : f32 to vector<32x128xf32>
    %7 = arith.maximumf %5, %6 : vector<32x128xf32>
    %c0_6 = arith.constant 0 : index
    %c0_7 = arith.constant 0 : index
    %8 = vector.load %arg4[%c0_6, %c0_7] : memref<1x32xf32, #tpu.memory_space<vmem>>, vector<1x32xf32>
    %cst_8 = arith.constant dense<0.000000e+00> : vector<1x128xf32>
    %9 = tpu.matmul %8, %7, %cst_8 {dimension_numbers = #tpu.dot_dimension_numbers<[1], [0], [0], [1], [0, 0, 1, 1], [], []>} : vector<1x32xf32>, vector<32x128xf32>, vector<1x128xf32> -> vector<1x128xf32>
    %c0_9 = arith.constant 0 : index
    %c0_10 = arith.constant 0 : index
    %10 = vector.load %arg5[%c0_9, %c0_10] : memref<1x1xf32, #tpu.memory_space<vmem>>, vector<1x1xf32>
    %11 = vector.broadcast %10 : vector<1x1xf32> to vector<1x128xf32>
    %12 = arith.addf %9, %11 : vector<1x128xf32>
    %c0_11 = arith.constant 0 : index
    %c0_12 = arith.constant 0 : index
    %13 = vector.load %arg6[%c0_11, %c0_12] : memref<1x128xf32, #tpu.memory_space<vmem>>, vector<1x128xf32>
    tpu.vector_store %arg6[%c0_11, %c0_12], %12 {strides = array<i32>} : memref<1x128xf32, #tpu.memory_space<vmem>>, vector<1x128xf32>,
    return
  }
  func.func @transform_0(%arg0: i32) -> (i32, i32) {
    %c0_i32 = arith.constant 0 : i32
    %c0_i32_0 = arith.constant 0 : i32
    return %c0_i32, %arg0 : i32, i32
  }
  func.func @transform_1(%arg0: i32) -> (i32, i32) {
    %c0_i32 = arith.constant 0 : i32
    %c0_i32_0 = arith.constant 0 : i32
    %c0_i32_1 = arith.constant 0 : i32
    return %c0_i32, %c0_i32_0 : i32, i32
  }
  func.func @transform_2(%arg0: i32) -> (i32, i32) {
    %c0_i32 = arith.constant 0 : i32
    %c0_i32_0 = arith.constant 0 : i32
    %c0_i32_1 = arith.constant 0 : i32
    return %c0_i32, %c0_i32_0 : i32, i32
  }
  func.func @transform_3(%arg0: i32) -> (i32, i32) {
    %c0_i32 = arith.constant 0 : i32
    %c0_i32_0 = arith.constant 0 : i32
    %c0_i32_1 = arith.constant 0 : i32
    return %c0_i32, %c0_i32_0 : i32, i32
  }
  func.func @transform_4(%arg0: i32) -> (i32, i32) {
    %c0_i32 = arith.constant 0 : i32
    %c0_i32_0 = arith.constant 0 : i32
    %c0_i32_1 = arith.constant 0 : i32
    return %c0_i32, %c0_i32_0 : i32, i32
  }
  func.func @transform_5(%arg0: i32) -> (i32, i32) {
    %c0_i32 = arith.constant 0 : i32
    %c0_i32_0 = arith.constant 0 : i32
    return %c0_i32, %arg0 : i32, i32
  }
}

</mosaic_0001>

<llo_original>
// kernel: tpu_custom_call.1
$region0: #{tpu_custom_call.1}
  #allocation0 [shape = 'u32[]', space=smem, size = 0x4, offset = 0x4, fixed_abs, tag = 'smem constant byte address 0x4 - core index']
  #allocation1 [shape = 'u32[144,128]{1,0:T(1,128)}', space=vmem, size = 0x12000, scoped, tag = 'internal scratch']
  #allocation2 [shape = 'f32[1,1]{1,0:T(1,128)S(1)}', space=vmem, size = 0x200, scoped, tag = 'scoped memory for tpu_custom_call.1']
  %s0 = inlined_call_operand.vmem [shape: f32[10,128], index: 0, kind: input, shape index: {}]
  %s1 = inlined_call_operand.vmem [shape: f32[32,10], index: 1, kind: input, shape index: {}]
  %s2 = inlined_call_operand.vmem [shape: f32[32,1], index: 2, kind: input, shape index: {}]
  %s3 = inlined_call_operand.vmem [shape: f32[1,32], index: 3, kind: input, shape index: {}]
  %s4 = inlined_call_operand.<no memory space> [shape: f32[1,1], index: 4, kind: input, shape index: {}]
  %s5 = inlined_call_operand.hbm [shape: f32[1,128], index: 5, kind: output, shape index: {}]
  %s6 = sld [smem:[#allocation0]]
  $region30: #{tpu_custom_call.1} parent=0
    _
  %s8 = ssub.s32 1, %s6
  %s9 = scalar_select 0, %s8, %s6
  %v10 = vstv %s4
  %11 = vst [vmem:[#allocation2] sm:$0x1] %v10
  $region1: #{tpu_custom_call.1} parent=0
    #allocation3 [shape = 'u8[512]{0}', space=vmem, size = 0x400, scoped, tag = 'output window, operand 0, single buffered']
    #allocation4 [shape = 's32[1]{0}', space=sflag, size = 0x4, scoped, tag = 'scoped memory for tpu_custom_call.1']
    %12 = vsyncpa [#allocation4], 0
    // Predicated region
    $region2: #{tpu_custom_call.1} parent=1 // pred_check
      _
    $region3: #{tpu_custom_call.1} parent=1 // pred_check_branch
      %14 = sbr.rel (0) target = $region5
    $region4: #{tpu_custom_call.1} parent=1 // pred_region
      _
    $region5: #{tpu_custom_call.1} parent=1 // pred_fallthru
      _
    // Predicated region
    $region6: #{tpu_custom_call.1} parent=1 // pred_check
      _
    $region7: #{tpu_custom_call.1} parent=1 // pred_check_branch
      %16 = sbr.rel (0) target = $region9
    $region8: #{tpu_custom_call.1} parent=1 // pred_region
      _
    $region9: #{tpu_custom_call.1} parent=1 // pred_fallthru
      _
    // Predicated region
    $region10: #{tpu_custom_call.1} parent=1 // pred_check
      _
    $region11: #{tpu_custom_call.1} parent=1 // pred_check_branch
      %18 = sbr.rel (0) target = $region13
    $region12: #{tpu_custom_call.1} parent=1 // pred_region
      _
    $region13: #{tpu_custom_call.1} parent=1 // pred_fallthru
      _
    // Predicated region
    $region14: #{tpu_custom_call.1} parent=1 // pred_check
      _
    $region15: #{tpu_custom_call.1} parent=1 // pred_check_branch
      %20 = sbr.rel (0) target = $region17
    $region16: #{tpu_custom_call.1} parent=1 // pred_region
      _
    $region17: #{tpu_custom_call.1} parent=1 // pred_fallthru
      _
    // Predicated region
    $region18: #{tpu_custom_call.1} parent=1 // pred_check
      _
    $region19: #{tpu_custom_call.1} parent=1 // pred_check_branch
      %22 = sbr.rel (0) target = $region21
    $region20: #{tpu_custom_call.1} parent=1 // pred_region
      _
    $region21: #{tpu_custom_call.1} parent=1 // pred_fallthru
      _
    %v23 = vld [vmem:[%s0] sm:$0xff]
    %v24 = vld [vmem:[%s0 + $0x8] sm:$0x3]
    %v25 = vld [vmem:[%s1] sm:$0xff]
    %v26 = vld [vmem:[%s1 + $0x8] sm:$0xff]
    %v27 = vld [vmem:[%s1 + $0x10] sm:$0xff]
    %v28 = vld [vmem:[%s1 + $0x18] sm:$0xff]
    %v29 = vld [vmem:[%s2] sm:$0xff]
    %v30 = vld [vmem:[%s2 + $0x8] sm:$0xff]
    %v31 = vld [vmem:[%s2 + $0x10] sm:$0xff]
    %v32 = vld [vmem:[%s2 + $0x18] sm:$0xff]
    %34 = vset.pattern.permute.xlu0 0
    %35 = vperm.xlu0 %34, %v29
    %v36 = vpop.permute.xlu0 %35
    %39 = vset.pattern.permute.xlu0 0
    %40 = vperm.xlu0 %39, %v30
    %v41 = vpop.permute.xlu0 %40
    %44 = vset.pattern.permute.xlu0 0
    %45 = vperm.xlu0 %44, %v31
    %v46 = vpop.permute.xlu0 %45
    %49 = vset.pattern.permute.xlu0 0
    %50 = vperm.xlu0 %49, %v32
    %v51 = vpop.permute.xlu0 %50
    %vm53 = vcmask 80896
    %v55 = vsel %vm53, %v25, 0
    %v58 = vsel %vm53, %v26, 0
    %v61 = vsel %vm53, %v27, 0
    %v64 = vsel %vm53, %v28, 0
    %vm66 = vcmask 1041408
    %v68 = vsel %vm66, %v24, 0
    %70 = vmatprep.subr.mxu0 0.0
    %71 = vmatpush1.msra.mxu0 0.0
    %72 = vmatprep.subr.mxu0 0.0
    %73 = vmatpush1.msra.mxu0 0.0
    %74 = vmatprep.subr.mxu0 0.0
    %75 = vmatpush1.msra.mxu0 0.0
    %76 = vmatprep.subr.mxu0 0.0
    %77 = vmatpush1.msra.mxu0 0.0
    %78 = vmatprep.subr.mxu0 0.0
    %79 = vmatpush1.msra.mxu0 0.0
    %80 = vmatprep.subr.mxu0 0.0
    %81 = vmatpush1.msra.mxu0 0.0
    %82 = vmatprep.subr.mxu0 0.0
    %83 = vmatpush1.msra.mxu0 0.0
    %84 = vmatprep.subr.mxu0 0.0
    %85 = vmatpush1.msra.mxu0 0.0
    %86 = vmatprep.subr.mxu0 0.0
    %87 = vmatpush1.msra.mxu0 0.0
    %88 = vmatprep.subr.mxu0 0.0
    %89 = vmatpush1.msra.mxu0 0.0
    %90 = vmatprep.subr.mxu0 0.0
    %91 = vmatpush1.msra.mxu0 0.0
    %92 = vmatprep.subr.mxu0 0.0
    %93 = vmatpush1.msra.mxu0 0.0
    %94 = vmatprep.subr.mxu0 0.0
    %95 = vmatpush1.msra.mxu0 0.0
    %96 = vmatprep.subr.mxu0 0.0
    %97 = vmatpush1.msra.mxu0 0.0
    %98 = vmatprep.subr.mxu0 0.0
    %99 = vmatpush1.msra.mxu0 %v68
    %100 = vmatprep.subr.mxu0 0.0
    %101 = vmatpush1.msra.mxu0 %v23
    %102 = vmatprep.subr.mxu0 0.0
    %103 = vmatpush2.msra.mxu0 0.0
    %104 = vmatprep.subr.mxu0 0.0
    %105 = vmatpush2.msra.mxu0 0.0
    %106 = vmatprep.subr.mxu0 0.0
    %107 = vmatpush2.msra.mxu0 0.0
    %108 = vmatprep.subr.mxu0 0.0
    %109 = vmatpush2.msra.mxu0 0.0
    %110 = vmatprep.subr.mxu0 0.0
    %111 = vmatpush2.msra.mxu0 0.0
    %112 = vmatprep.subr.mxu0 0.0
    %113 = vmatpush2.msra.mxu0 0.0
    %114 = vmatprep.subr.mxu0 0.0
    %115 = vmatpush2.msra.mxu0 0.0
    %116 = vmatprep.subr.mxu0 0.0
    %117 = vmatpush2.msra.mxu0 0.0
    %118 = vmatprep.subr.mxu0 0.0
    %119 = vmatpush2.msra.mxu0 0.0
    %120 = vmatprep.subr.mxu0 0.0
    %121 = vmatpush2.msra.mxu0 0.0
    %122 = vmatprep.subr.mxu0 0.0
    %123 = vmatpush2.msra.mxu0 0.0
    %124 = vmatprep.subr.mxu0 0.0
    %125 = vmatpush2.msra.mxu0 0.0
    %126 = vmatprep.subr.mxu0 0.0
    %127 = vmatpush2.msra.mxu0 0.0
    %128 = vmatprep.subr.mxu0 0.0
    %129 = vmatpush2.msra.mxu0 0.0
    %130 = vmatprep.subr.mxu0 0.0
    %131 = vmatpush2.msra.mxu0 0.0
    %132 = vmatprep.subr.mxu0 0.0
    %133 = vmatpush2.msra.mxu0 0.0
    %134 = vmatprep.mubr.f32.mxu0 0.0
    %135 = vmatmul.mubr.f32.gmra.mxu0 %v55
    %v136 = vpop.f32.mrf.mxu0
    %v137 = vadd.f32 %v36, %v136
    %v138 = vpop.f32.mrf.mxu0
    %139 = vmatprep.mubr.f32.mxu0 0.0
    %140 = vmatmul.mubr.f32.gmra.mxu0 %v58
    %v141 = vpop.f32.mrf.mxu0
    %v142 = vadd.f32 %v41, %v141
    %v143 = vpop.f32.mrf.mxu0
    %144 = vmatprep.mubr.f32.mxu0 0.0
    %145 = vmatmul.mubr.f32.gmra.mxu0 %v61
    %v146 = vpop.f32.mrf.mxu0
    %v147 = vadd.f32 %v46, %v146
    %v148 = vpop.f32.mrf.mxu0
    %149 = vmatprep.mubr.f32.mxu0 0.0
    %150 = vmatmul.mubr.f32.gmra.mxu0 %v64
    %v151 = vpop.f32.mrf.mxu0
    %v152 = vadd.f32 %v51, %v151
    %v153 = vpop.f32.mrf.mxu0
    %154 = vdwg.mxu0
    %v155 = vmax.f32 %v137, 0.0
    %v156 = vmax.f32 %v142, 0.0
    %v157 = vmax.f32 %v147, 0.0
    %v158 = vmax.f32 %v152, 0.0
    %v159 = vld [vmem:[%s3] sm:$0x1]
    %v160 = vld [vmem:[#allocation2] sm:$0x1]
    %162 = vset.pattern.permute.xlu0 0
    %163 = vperm.xlu0 %162, %v160
    %v164 = vpop.permute.xlu0 %163
    %v166 = vlaneseq
    %v167 = vshrl.u32 %v166, 7
    %v168 = vsub.s32 0, %v167
    %v169 = vrot.slane %v164, %v168
    %vm170 = vcmask 261120
    %v172 = vsel %vm170, %v159, 0
    %174 = vmatprep.subr.mxu0 0.0
    %175 = vmatpush1.msra.mxu0 0.0
    %176 = vmatprep.subr.mxu0 0.0
    %177 = vmatpush1.msra.mxu0 0.0
    %178 = vmatprep.subr.mxu0 0.0
    %179 = vmatpush1.msra.mxu0 0.0
    %180 = vmatprep.subr.mxu0 0.0
    %181 = vmatpush1.msra.mxu0 0.0
    %182 = vmatprep.subr.mxu0 0.0
    %183 = vmatpush1.msra.mxu0 0.0
    %184 = vmatprep.subr.mxu0 0.0
    %185 = vmatpush1.msra.mxu0 0.0
    %186 = vmatprep.subr.mxu0 0.0
    %187 = vmatpush1.msra.mxu0 0.0
    %188 = vmatprep.subr.mxu0 0.0
    %189 = vmatpush1.msra.mxu0 0.0
    %190 = vmatprep.subr.mxu0 0.0
    %191 = vmatpush1.msra.mxu0 0.0
    %192 = vmatprep.subr.mxu0 0.0
    %193 = vmatpush1.msra.mxu0 0.0
    %194 = vmatprep.subr.mxu0 0.0
    %195 = vmatpush1.msra.mxu0 0.0
    %196 = vmatprep.subr.mxu0 0.0
    %197 = vmatpush1.msra.mxu0 0.0
    %198 = vmatprep.subr.mxu0 0.0
    %199 = vmatpush1.msra.mxu0 %v158
    %200 = vmatprep.subr.mxu0 0.0
    %201 = vmatpush1.msra.mxu0 %v157
    %202 = vmatprep.subr.mxu0 0.0
    %203 = vmatpush1.msra.mxu0 %v156
    %204 = vmatprep.subr.mxu0 0.0
    %205 = vmatpush1.msra.mxu0 %v155
    %206 = vmatprep.subr.mxu0 0.0
    %207 = vmatpush2.msra.mxu0 0.0
    %208 = vmatprep.subr.mxu0 0.0
    %209 = vmatpush2.msra.mxu0 0.0
    %210 = vmatprep.subr.mxu0 0.0
    %211 = vmatpush2.msra.mxu0 0.0
    %212 = vmatprep.subr.mxu0 0.0
    %213 = vmatpush2.msra.mxu0 0.0
    %214 = vmatprep.subr.mxu0 0.0
    %215 = vmatpush2.msra.mxu0 0.0
    %216 = vmatprep.subr.mxu0 0.0
    %217 = vmatpush2.msra.mxu0 0.0
    %218 = vmatprep.subr.mxu0 0.0
    %219 = vmatpush2.msra.mxu0 0.0
    %220 = vmatprep.subr.mxu0 0.0
    %221 = vmatpush2.msra.mxu0 0.0
    %222 = vmatprep.subr.mxu0 0.0
    %223 = vmatpush2.msra.mxu0 0.0
    %224 = vmatprep.subr.mxu0 0.0
    %225 = vmatpush2.msra.mxu0 0.0
    %226 = vmatprep.subr.mxu0 0.0
    %227 = vmatpush2.msra.mxu0 0.0
    %228 = vmatprep.subr.mxu0 0.0
    %229 = vmatpush2.msra.mxu0 0.0
    %230 = vmatprep.subr.mxu0 0.0
    %231 = vmatpush2.msra.mxu0 0.0
    %232 = vmatprep.subr.mxu0 0.0
    %233 = vmatpush2.msra.mxu0 0.0
    %234 = vmatprep.subr.mxu0 0.0
    %235 = vmatpush2.msra.mxu0 0.0
    %236 = vmatprep.subr.mxu0 0.0
    %237 = vmatpush2.msra.mxu0 0.0
    %238 = vmatprep.mubr.f32.mxu0 0.0
    %239 = vmatmul.mubr.f32.gmra.mxu0 %v172
    %v240 = vpop.f32.mrf.mxu0
    %v241 = vadd.f32 %v169, %v240
    %v242 = vpop.f32.mrf.mxu0
    %243 = vdwg.mxu0
    %244 = vst [vmem:[#allocation3] sm:$0x1] %v241
    // Predicated region
    $region22: #{tpu_custom_call.1} parent=1 // pred_check
      _
    $region23: #{tpu_custom_call.1} parent=1 // pred_check_branch
      %246 = sbr.rel (0) target = $region25
    $region24: #{tpu_custom_call.1} parent=1 // pred_region
      %s248 = ssub.s32 16, 16
      %249 = vsyncadd [#allocation4], %s248
      %s251 = sshll.u32 [#allocation3], 4
      %s252 = int_to_ptr.vmem [resolvable:$true] %s251
      %254 = dma.vmem_to_hbm [thread:$0]  %s252, 16, %s5, [#allocation4]
    $region25: #{tpu_custom_call.1} parent=1 // pred_fallthru
      _
    // Predicated region
    $region26: #{tpu_custom_call.1} parent=1 // pred_check
      _
    $region27: #{tpu_custom_call.1} parent=1 // pred_check_branch
      %256 = sbr.rel (0) target = $region29
    $region28: #{tpu_custom_call.1} parent=1 // pred_region
      %257 = dma.done [#allocation4], 16
    $region29: #{tpu_custom_call.1} parent=1 // pred_fallthru
      _
    %258 = vsyncpa [#allocation4], 1

</llo_original>
